<compile_context>
chip_gen: v6e
topology: v6e:2x2x1
jax: 0.10.0
libtpu: 0.0.40
codegen_flags: <defaults>
</compile_context>

<pallas_src>
import functools

import numpy as np

import jax
import jax.numpy as jnp
from jax.experimental import pallas as pl
from jax.experimental.pallas import tpu as pltpu

_LANE = 128
_ALIGN = 16          # sublane alignment covering both bf16 (16,128) and f32 (8,128)
_NEG_MASK = -1e30    # effectively -inf for padded output lanes (f32 bias, never fp16)


def _round_up(x, m):
    return ((x + m - 1) // m) * m


@functools.lru_cache(maxsize=None)
def _vmem_limit_bytes() -> int:
    """Generation-aware scoped-VMEM limit (conservative fallback = 64 MiB physical)."""
    phys = 64 * 1024 * 1024
    try:
        phys = int(pltpu.get_tpu_info().vmem_capacity_bytes)
    except Exception:
        pass
    return int(max(32 * 1024 * 1024, min(phys * 3 // 4, 100 * 1024 * 1024)))


def actor_head_kernel(x_ref, wt_ref, b_ref, out_ref):
    # x:  (TB, K)       bf16 batch tile
    # wt: (K,  N_pad)   bf16, whole array resident in VMEM (not pipelined)
    # b:  (1,  N_pad)   f32, padded lanes hold -1e30
    # out:(TB, N_pad)   normalized logits (padded lanes garbage, sliced off outside)
    logits = jnp.dot(x_ref[...], wt_ref[...], preferred_element_type=jnp.float32)
    logits = logits + b_ref[...]

    # CategoricalDistr(logits=...).logits == logits - logsumexp(logits, -1)
    m = jnp.max(logits, axis=-1, keepdims=True)
    shifted = logits - m
    lse = jnp.log(jnp.sum(jnp.exp(shifted), axis=-1, keepdims=True))
    out_ref[...] = (shifted - lse).astype(out_ref.dtype)


def prepare_actor_params(weight, bias, *, compute_dtype=jnp.bfloat16):
    """One-time parameter prep (hoisted out of the per-call path).

    weight: (num_outputs, num_inputs) PyTorch layout
    bias:   (num_outputs,)
    Returns (w_t_padded, bias_padded, num_outputs):
      w_t_padded: (num_inputs, N_pad) in compute_dtype (bf16 by default) with
                  zero-padded extra columns
      bias_padded: (1, N_pad) f32, padded lanes = -1e30 (masks them out of LSE)
    """
    num_outputs, num_inputs = weight.shape
    n_pad = _round_up(max(num_outputs, _LANE), _LANE)
    w_t = (
        jnp.zeros((num_inputs, n_pad), compute_dtype)
        .at[:, :num_outputs]
        .set(weight.T.astype(compute_dtype))
    )
    b = (
        jnp.full((1, n_pad), _NEG_MASK, dtype=jnp.float32)
        .at[0, :num_outputs]
        .set(bias.astype(jnp.float32))
    )
    return w_t, b, num_outputs


@functools.partial(jax.jit, static_argnames=("num_outputs", "max_tb", "out_dtype"))
def _linear_actor_head_pallas(x, w_t_pad, b_pad, *, num_outputs, max_tb=512,
                              out_dtype=jnp.float32):
    B, K = x.shape
    Kw, n_pad = w_t_pad.shape
    assert Kw == K, "weight / activation feature dims disagree"

    compute_dtype = w_t_pad.dtype
    x = x.astype(compute_dtype)  # bf16 at the call boundary; f32 accumulation in-kernel

    in_itemsize = np.dtype(compute_dtype).itemsize
    out_itemsize = np.dtype(out_dtype).itemsize

    # --- VMEM-aware tile-size cap -------------------------------------------------
    vmem_limit = _vmem_limit_bytes()
    resident = (w_t_pad.size * np.dtype(w_t_pad.dtype).itemsize
                + b_pad.size * np.dtype(b_pad.dtype).itemsize)
    # double-buffered x tile + double-buffered out tile, per row
    row_bytes = 2 * K * in_itemsize + 2 * n_pad * out_itemsize
    budget = max(vmem_limit - resident - (4 << 20), 1 << 20)
    tb_cap = max(_ALIGN, (budget // max(row_bytes, 1)) // _ALIGN * _ALIGN)
    max_tb_eff = max(_ALIGN, (min(max_tb, tb_cap) // _ALIGN) * _ALIGN)

    # --- Batch tiling with minimal padding ----------------------------------------
    b_aligned = _round_up(B, _ALIGN)
    if b_aligned <= max_tb_eff:
        tb = b_aligned                      # one tile, no waste beyond alignment
    else:
        n_tiles = pl.cdiv(b_aligned, max_tb_eff)
        tb = _round_up(pl.cdiv(b_aligned, n_tiles), _ALIGN)
    b_padded = _round_up(b_aligned, tb)
    if b_padded != B:
        x = jnp.pad(x, ((0, b_padded - B), (0, 0)))
    grid = (b_padded // tb,)

    out = pl.pallas_call(
        actor_head_kernel,
        out_shape=jax.ShapeDtypeStruct((b_padded, n_pad), out_dtype),
        grid=grid,
        in_specs=[
            # batch-tiled activations (pipelined / double-buffered)
            pl.BlockSpec((tb, K), lambda i: (i, 0)),
            # whole weight + bias resident in VMEM once (not grid-pipelined)
            pl.BlockSpec(memory_space=pltpu.MemorySpace.VMEM),
            pl.BlockSpec(memory_space=pltpu.MemorySpace.VMEM),
        ],
        out_specs=pl.BlockSpec((tb, n_pad), lambda i: (i, 0)),
        compiler_params=pltpu.CompilerParams(
            # TODO(synk): on v7x with >=2 grid steps, CORE_PARALLEL would split the
            # batch axis across the two TensorCores; kept "parallel" for portability.
            dimension_semantics=("parallel",),
            vmem_limit_bytes=vmem_limit,
        ),
    )(x, w_t_pad, b_pad)

    # Slice only when padding actually happened (avoids an extra HBM pass otherwise).
    if b_padded != B or n_pad != num_outputs:
        out = out[:B, :num_outputs]
    return out


@functools.partial(jax.jit, static_argnames=("num_outputs",))
def _linear_actor_head_xla(x, w_t_pad, b_pad, *, num_outputs):
    """Fused XLA path for tiny batches where pallas_call fixed cost dominates."""
    logits = jnp.dot(x.astype(w_t_pad.dtype), w_t_pad,
                     preferred_element_type=jnp.float32)
    logits = logits[:, :num_outputs] + b_pad[0, :num_outputs]
    return logits - jax.scipy.special.logsumexp(logits, axis=-1, keepdims=True)


def linear_actor_head(x, w_t_pad, b_pad, *, num_outputs, max_tb=512,
                      out_dtype=jnp.float32, min_pallas_batch=0):
    """x: (B, num_inputs). Returns normalized logits (B, num_outputs)
    == CategoricalDistr(logits = x @ W^T + b).logits."""
    if x.shape[0] < min_pallas_batch:
        return _linear_actor_head_xla(x, w_t_pad, b_pad,
                                      num_outputs=num_outputs).astype(out_dtype)
    return _linear_actor_head_pallas(x, w_t_pad, b_pad, num_outputs=num_outputs,
                                     max_tb=max_tb, out_dtype=out_dtype)


def orthogonal_init(key, shape, gain):
    """Deterministic orthogonal init matching nn.init.orthogonal_ semantics."""
    rows, cols = shape
    flat_shape = (rows, cols) if rows >= cols else (cols, rows)
    a = jax.random.normal(key, flat_shape, dtype=jnp.float32)
    q, r = jnp.linalg.qr(a)
    d = jnp.sign(jnp.diag(r))
    q = q * d[None, :]
    if rows < cols:
        q = q.T
    return gain * q[:rows, :cols]


if __name__ == "__main__":
    num_inputs = 32
    num_outputs = 16
    batch = 8

    key = jax.random.PRNGKey(0)
    k_x, k_w = jax.random.split(key)

    # Parameters: orthogonal weight (gain=0.01), zero bias — as in __init__.
    weight = orthogonal_init(k_w, (num_outputs, num_inputs), gain=0.01)
    bias = jnp.zeros((num_outputs,), dtype=jnp.float32)

    # One-time prep: transpose + lane-pad + bf16 cast (hoisted out of the per-call path).
    w_t_pad, b_pad, n_out = prepare_actor_params(weight, bias)

    # Input
    x = jax.random.normal(k_x, (batch, num_inputs), dtype=jnp.float32)

    out = linear_actor_head(x, w_t_pad, b_pad, num_outputs=n_out)
    jax.block_until_ready(out)
    assert out.shape == (batch, num_outputs)

    # Reference with the same bf16 operands the kernel feeds the MXU (f32 accumulation).
    xe = x.astype(jnp.bfloat16).astype(jnp.float32)
    we = weight.astype(jnp.bfloat16).astype(jnp.float32)
    ref_logits = xe @ we.T + bias
    ref = ref_logits - jax.scipy.special.logsumexp(ref_logits, axis=-1, keepdims=True)
    assert jnp.allclose(out, ref, atol=1e-4, rtol=1e-4), "mismatch vs bf16-operand reference"

    # Looser sanity check vs the full-f32 reference.
    ref32_logits = x @ weight.T + bias
    ref32 = ref32_logits - jax.scipy.special.logsumexp(ref32_logits, axis=-1, keepdims=True)
    assert jnp.allclose(out, ref32, atol=5e-2), "mismatch vs f32 reference"

    # TODO(synk): CategoricalDistr is a distribution wrapper (sample/entropy/log_prob);
    # the kernel returns its normalized .logits tensor, which fully determines it.
    print("KERNEL_OK")
</pallas_src>

<mosaic_0001>
module attributes {stable_mosaic.version = 11 : i64} {
  func.func @actor_head_kernel(%arg0: i32, %arg1: memref<16x32xbf16, #tpu.memory_space<vmem>>, %arg2: memref<32x128xbf16, #tpu.memory_space<vmem>>, %arg3: memref<1x128xf32, #tpu.memory_space<vmem>>, %arg4: memref<16x128xf32, #tpu.memory_space<vmem>>) attributes {dimension_semantics = [#tpu.dimension_semantics<parallel>], iteration_bounds = array<i64: 1>, scalar_prefetch = 0 : i64, scratch_operands = 0 : i64, tpu.core_type = #tpu.core_type<tc>, window_params = [{transform_indices = @transform_0, window_bounds = array<i64: 16, 32>}, {pipeline_mode = #tpu.pipeline_mode<synchronous>, transform_indices = @transform_1, window_bounds = array<i64: 32, 128>}, {pipeline_mode = #tpu.pipeline_mode<synchronous>, transform_indices = @transform_2, window_bounds = array<i64: 1, 128>}, {transform_indices = @transform_3, window_bounds = array<i64: 16, 128>}]} {
    %c0 = arith.constant 0 : index
    %c0_0 = arith.constant 0 : index
    %0 = vector.load %arg1[%c0, %c0_0] : memref<16x32xbf16, #tpu.memory_space<vmem>>, vector<16x32xbf16>
    %c0_1 = arith.constant 0 : index
    %c0_2 = arith.constant 0 : index
    %1 = vector.load %arg2[%c0_1, %c0_2] : memref<32x128xbf16, #tpu.memory_space<vmem>>, vector<32x128xbf16>
    %cst = arith.constant dense<0.000000e+00> : vector<16x128xf32>
    %2 = tpu.matmul %0, %1, %cst {dimension_numbers = #tpu.dot_dimension_numbers<[1], [0], [0], [1], [0, 0, 1, 1], [], []>} : vector<16x32xbf16>, vector<32x128xbf16>, vector<16x128xf32> -> vector<16x128xf32>
    %c0_3 = arith.constant 0 : index
    %c0_4 = arith.constant 0 : index
    %3 = vector.load %arg3[%c0_3, %c0_4] : memref<1x128xf32, #tpu.memory_space<vmem>>, vector<1x128xf32>
    %4 = vector.broadcast %3 : vector<1x128xf32> to vector<16x128xf32>
    %5 = arith.addf %2, %4 : vector<16x128xf32>
    %cst_5 = arith.constant dense<0xFF800000> : vector<16xf32>
    %6 = vector.multi_reduction <maximumf>, %5, %cst_5 [1] : vector<16x128xf32> to vector<16xf32>
    %7 = vector.shape_cast %6 : vector<16xf32> to vector<16x1xf32>
    %8 = vector.broadcast %7 : vector<16x1xf32> to vector<16x128xf32>
    %9 = arith.subf %5, %8 : vector<16x128xf32>
    %10 = math.exp %9 : vector<16x128xf32>
    %cst_6 = arith.constant dense<0.000000e+00> : vector<16xf32>
    %11 = vector.multi_reduction <add>, %10, %cst_6 [1] : vector<16x128xf32> to vector<16xf32>
    %12 = vector.shape_cast %11 : vector<16xf32> to vector<16x1xf32>
    %13 = math.log %12 : vector<16x1xf32>
    %14 = vector.broadcast %13 : vector<16x1xf32> to vector<16x128xf32>
    %15 = arith.subf %9, %14 : vector<16x128xf32>
    %c0_7 = arith.constant 0 : index
    %c0_8 = arith.constant 0 : index
    %16 = vector.load %arg4[%c0_7, %c0_8] : memref<16x128xf32, #tpu.memory_space<vmem>>, vector<16x128xf32>
    tpu.vector_store %arg4[%c0_7, %c0_8], %15 {strides = array<i32>} : memref<16x128xf32, #tpu.memory_space<vmem>>, vector<16x128xf32>,
    return
  }
  func.func @transform_0(%arg0: i32) -> (i32, i32) {
    %c0_i32 = arith.constant 0 : i32
    %c0_i32_0 = arith.constant 0 : i32
    return %arg0, %c0_i32 : i32, i32
  }
  func.func @transform_1(%arg0: i32) -> (i32, i32) {
    %c0_i32 = arith.constant 0 : i32
    %c0_i32_0 = arith.constant 0 : i32
    %c0_i32_1 = arith.constant 0 : i32
    return %c0_i32, %c0_i32_0 : i32, i32
  }
  func.func @transform_2(%arg0: i32) -> (i32, i32) {
    %c0_i32 = arith.constant 0 : i32
    %c0_i32_0 = arith.constant 0 : i32
    %c0_i32_1 = arith.constant 0 : i32
    return %c0_i32, %c0_i32_0 : i32, i32
  }
  func.func @transform_3(%arg0: i32) -> (i32, i32) {
    %c0_i32 = arith.constant 0 : i32
    %c0_i32_0 = arith.constant 0 : i32
    return %arg0, %c0_i32 : i32, i32
  }
}

</mosaic_0001>

<llo_original>
// kernel: _linear_actor_head_pallas.1
$region0: #{_linear_actor_head_pallas.1}
  #allocation0 [shape = 'u32[]', space=smem, size = 0x4, offset = 0x4, fixed_abs, tag = 'smem constant byte address 0x4 - core index']
  #allocation1 [shape = 'u32[144,128]{1,0:T(1,128)}', space=vmem, size = 0x12000, scoped, tag = 'internal scratch']
  %s0 = inlined_call_operand.vmem [shape: bf16[16,32], index: 0, kind: input, shape index: {}]
  %s1 = inlined_call_operand.vmem [shape: bf16[32,128], index: 1, kind: input, shape index: {}]
  %s2 = inlined_call_operand.vmem [shape: f32[1,128], index: 2, kind: input, shape index: {}]
  %s3 = inlined_call_operand.vmem [shape: f32[16,128], index: 3, kind: output, shape index: {}]
  %s4 = sld [smem:[#allocation0]]
  $region22: #{_linear_actor_head_pallas.1} parent=0
    _
  %s6 = ssub.s32 1, %s4
  %s7 = scalar_select 0, %s6, %s4
  // Predicated region
  $region2: #{_linear_actor_head_pallas.1} parent=0 // pred_check
    _
  $region3: #{_linear_actor_head_pallas.1} parent=0 // pred_check_branch
    %9 = sbr.rel (0) target = $region5
  $region4: #{_linear_actor_head_pallas.1} parent=0 // pred_region
    _
  $region5: #{_linear_actor_head_pallas.1} parent=0 // pred_fallthru
    _
  // Predicated region
  $region6: #{_linear_actor_head_pallas.1} parent=0 // pred_check
    _
  $region7: #{_linear_actor_head_pallas.1} parent=0 // pred_check_branch
    %11 = sbr.rel (0) target = $region9
  $region8: #{_linear_actor_head_pallas.1} parent=0 // pred_region
    _
  $region9: #{_linear_actor_head_pallas.1} parent=0 // pred_fallthru
    _
  // Predicated region
  $region10: #{_linear_actor_head_pallas.1} parent=0 // pred_check
    _
  $region11: #{_linear_actor_head_pallas.1} parent=0 // pred_check_branch
    %13 = sbr.rel (0) target = $region13
  $region12: #{_linear_actor_head_pallas.1} parent=0 // pred_region
    _
  $region13: #{_linear_actor_head_pallas.1} parent=0 // pred_fallthru
    _
  %v15 = vld [vmem:[%s0] sm:$0xf]
  %v16 = vld [vmem:[%s0 + $0x4] sm:$0xf]
  %v17 = vld [vmem:[%s1] sm:$0xf]
  %v18 = vld [vmem:[%s1 + $0x4] sm:$0xf]
  %v19 = vld [vmem:[%s1 + $0x8] sm:$0xf]
  %v20 = vld [vmem:[%s1 + $0xc] sm:$0xf]
  %v21 = vld [vmem:[%s2] sm:$0x1]
  %v23 = vlaneseq
  %v24 = vshrl.u32 %v23, 7
  %v25 = vsub.s32 0, %v24
  %v26 = vrot.slane %v21, %v25
  %v30 = vunpack.c.l.b16 %v15
  %v31 = vunpack.c.l.b16 %v16
  %v32 = vpack.c.b16 %v31, %v30
  %v37 = vunpack.c.l.b16 %v17
  %v38 = vunpack.c.l.b16 %v18
  %v39 = vunpack.c.l.b16 %v19
  %v40 = vunpack.c.l.b16 %v20
  %v41 = vpack.c.b16 %v38, %v37
  %v42 = vpack.c.b16 %v40, %v39
  %vm45 = vcmask 261120
  %v47 = vsel %vm45, %v32, 0
  %49 = vmatprep.subr.bf16.mxu0 0
  %50 = vmatpush1.bf16.msra.mxu0 0
  %51 = vmatprep.subr.bf16.mxu0 0
  %52 = vmatpush1.bf16.msra.mxu0 0
  %53 = vmatprep.subr.bf16.mxu0 0
  %54 = vmatpush1.bf16.msra.mxu0 0
  %55 = vmatprep.subr.bf16.mxu0 0
  %56 = vmatpush1.bf16.msra.mxu0 0
  %57 = vmatprep.subr.bf16.mxu0 0
  %58 = vmatpush1.bf16.msra.mxu0 0
  %59 = vmatprep.subr.bf16.mxu0 0
  %60 = vmatpush1.bf16.msra.mxu0 0
  %61 = vmatprep.subr.bf16.mxu0 0
  %62 = vmatpush1.bf16.msra.mxu0 %v42
  %63 = vmatprep.subr.bf16.mxu0 0
  %64 = vmatpush1.bf16.msra.mxu0 %v41
  %65 = vmatprep.subr.bf16.mxu0 0
  %66 = vmatpush2.bf16.msra.mxu0 0
  %67 = vmatprep.subr.bf16.mxu0 0
  %68 = vmatpush2.bf16.msra.mxu0 0
  %69 = vmatprep.subr.bf16.mxu0 0
  %70 = vmatpush2.bf16.msra.mxu0 0
  %71 = vmatprep.subr.bf16.mxu0 0
  %72 = vmatpush2.bf16.msra.mxu0 0
  %73 = vmatprep.subr.bf16.mxu0 0
  %74 = vmatpush2.bf16.msra.mxu0 0
  %75 = vmatprep.subr.bf16.mxu0 0
  %76 = vmatpush2.bf16.msra.mxu0 0
  %77 = vmatprep.subr.bf16.mxu0 0
  %78 = vmatpush2.bf16.msra.mxu0 0
  %79 = vmatprep.subr.bf16.mxu0 0
  %80 = vmatpush2.bf16.msra.mxu0 0
  %81 = vmatprep.mubr.bf16.mxu0 0
  %82 = vmatmul.mubr.bf16.gmra.mxu0 %v47
  %v83 = vpop.f32.mrf.mxu0
  %v84 = vadd.f32 %v26, %v83
  %v85 = vpop.f32.mrf.mxu0
  %v86 = vpop.f32.mrf.mxu0
  %v87 = vadd.f32 %v26, %v86
  %v88 = vpop.f32.mrf.mxu0
  %89 = vdwg.mxu0
  %90 = vmax.xlane.f32.xlu0 %v84
  %v91 = vpop.xlane.xlu0 %90
  %92 = vmax.xlane.f32.xlu0 %v87
  %v93 = vpop.xlane.xlu0 %92
  %v94 = vsub.f32 %v84, %v91
  %v95 = vsub.f32 %v87, %v93
  %v96 = vmul.f32 %v94, 1.442695
  %v97 = vpow.pop %v96
  %v98 = vmul.f32 %v95, 1.442695
  %v99 = vpow.pop %v98
  %100 = vadd.xlane.f32.xlu0 %v97
  %v101 = vpop.xlane.xlu0 %100
  %102 = vadd.xlane.f32.xlu0 %v99
  %v103 = vpop.xlane.xlu0 %102
  %v104 = vlog2.pop %v101
  %v105 = vmul.f32 %v104, 0.6931472
  %v106 = vlog2.pop %v103
  %v107 = vmul.f32 %v106, 0.6931472
  %v108 = vsub.f32 %v94, %v105
  %v109 = vsub.f32 %v95, %v107
  %110 = vst [vmem:[%s3] sm:$0xff] %v108
  %111 = vst [vmem:[%s3 + $0x8] sm:$0xff] %v109
  // Predicated region
  $region14: #{_linear_actor_head_pallas.1} parent=0 // pred_check
    _
  $region15: #{_linear_actor_head_pallas.1} parent=0 // pred_check_branch
    %113 = sbr.rel (0) target = $region17
  $region16: #{_linear_actor_head_pallas.1} parent=0 // pred_region
    _
  $region17: #{_linear_actor_head_pallas.1} parent=0 // pred_fallthru
    _
  // Predicated region
  $region18: #{_linear_actor_head_pallas.1} parent=0 // pred_check
    _
  $region19: #{_linear_actor_head_pallas.1} parent=0 // pred_check_branch
    %115 = sbr.rel (0) target = $region21
  $region20: #{_linear_actor_head_pallas.1} parent=0 // pred_region
    _
  $region21: #{_linear_actor_head_pallas.1} parent=0 // pred_fallthru
    _

</llo_original>
